<compile_context>
chip_gen: v5e
topology: v5e:2x2
jax: 0.10.0
libtpu: 0.0.40
codegen_flags: <defaults>
</compile_context>

<pallas_src>
import jax
import jax.numpy as jnp
import numpy as np
from jax import lax
from jax.experimental import pallas as pl
from jax.experimental.pallas import tpu as pltpu


def _cdiv(a, b):
    return -(-a // b)


# ---------------- Pallas kernels ----------------

def _stats_kernel(x_ref, g_ref):
    """Pass 1: accumulate the augmented Gram G_aug = x_aug^T x_aug.
    The trailing ones column makes G_aug carry sum(x x^T), sum(x) and the row
    count at once -- everything BatchNorm batch statistics need -- without ever
    materializing the (tm, 8*Cout) intermediate y."""
    @pl.when(pl.program_id(1) == 0)
    def _():
        g_ref[...] = jnp.zeros_like(g_ref)

    x = x_ref[...]
    g = lax.dot_general(x, x, (((0,), (0,)), ((), ())),
                        preferred_element_type=jnp.float32)
    g_ref[...] += g[None]


def _fused_out_kernel(x_ref, w_ref, o_ref):
    """Pass 2: one MXU matmul (bias + BN scale/shift folded into the augmented,
    block-diagonal weight), ReLU, single lane-dense (128-wide) store."""
    y = jnp.dot(x_ref[...], w_ref[...], preferred_element_type=jnp.float32)
    o_ref[...] = jnp.maximum(y, 0.0).astype(o_ref.dtype)


# ---------------- wrapper helpers ----------------

def _vmem_limit_bytes():
    """Generation-aware scoped-VMEM limit: ~48 MiB on v7x (64 MiB physical/core),
    ~96 MiB on v5e/v6e (128 MiB physical); conservative 48 MiB fallback."""
    cap = 64 << 20
    try:
        cap = int(pltpu.get_tpu_info().vmem_capacity_bytes)
    except Exception:
        pass
    return max(16 << 20, min((cap * 3) // 4, 96 << 20))


def _pick_tmp(in_lanes, out_lanes, vmem_limit, mp_rows, block_rows_packed):
    """Packed rows per block: biggest tile that fits the VMEM budget (double-buffered
    in + out), capped so tiny problems are not grossly over-padded."""
    budget = int(vmem_limit * 0.7)
    per_row = 2 * 4 * (in_lanes + out_lanes)          # 2 buffers x f32 x (in + out)
    fixed = 2 * 4 * (in_lanes * out_lanes) + (1 << 20)
    tmp = max(8, (budget - fixed) // per_row)
    tmp = min(tmp, 32768)                             # <= 16 MiB output tile
    half = max(8, _cdiv(_cdiv(mp_rows, 2), 8) * 8)    # cover problem with the 2-way split
    tmp = min(tmp, half)
    if block_rows_packed is not None:
        tmp = min(tmp, max(8, block_rows_packed))
    return max(8, (tmp // 8) * 8)


# ---------------- wrapper ----------------

def deds_conv(x, wdw, bdw, wp, bp, gamma, beta, eps=1e-5,
              block_rows=None, out_dtype=jnp.float32, channels_last_output=False):
    N, Cin, D, H, W = x.shape
    Cout = wp.shape[0]
    C8 = 8 * Cout                  # (kd,kh,kw) taps x output channels
    A = Cin + 1                    # input channels + ones column (bias row)
    M = N * D * H * W

    # Pack r consecutive voxels per matmul row so the output row is 128 lanes wide.
    r = 128 // C8 if (C8 < 128 and 128 % C8 == 0) else 1
    rA, rC8 = r * A, r * C8

    vmem_limit = _vmem_limit_bytes()
    Mp0 = _cdiv(M, r)
    brp = None if block_rows is None else max(1, block_rows // r)
    tmp = _pick_tmp(rA, rC8, vmem_limit, Mp0, brp)
    n_inner = _cdiv(Mp0, 2 * tmp)
    Mp_pad = 2 * tmp * n_inner
    M_pad = Mp_pad * r

    f32 = jnp.float32
    x = x.astype(f32)

    # ---- glue: channels-last flatten + ones column + zero pad + r-packing ----
    x2 = jnp.transpose(x, (0, 2, 3, 4, 1)).reshape(M, Cin)
    x_aug = jnp.concatenate([x2, jnp.ones((M, 1), f32)], axis=1)       # (M, A)
    if M_pad != M:
        x_aug = jnp.pad(x_aug, ((0, M_pad - M), (0, 0)))               # all-zero pad rows
    xp = x_aug.reshape(Mp_pad, rA)                                     # free contiguous view

    # ---- parameter folding: depthwise-transpose * pointwise -> W_aug (A, C8) ----
    wdw2 = wdw.astype(f32).reshape(Cin, 8)                             # tap k = kd*4+kh*2+kw
    wp2 = wp.astype(f32).reshape(Cout, Cin).T                          # (Cin, Cout)
    w_big = (wdw2[:, :, None] * wp2[:, None, :]).reshape(Cin, C8)      # (Cin, C8)
    b0 = bdw.astype(f32).reshape(1, Cin) @ wp2 + bp.astype(f32).reshape(1, Cout)
    b_big = jnp.tile(b0, (1, 8))                                       # (1, C8)
    w_aug = jnp.concatenate([w_big, b_big], axis=0)                    # (A, C8), pre-BN

    # ---- pass 1: augmented Gram (x-only sufficient statistics), megacore split ----
    g_slots = pl.pallas_call(
        _stats_kernel,
        out_shape=jax.ShapeDtypeStruct((2, rA, rA), f32),
        grid=(2, n_inner),
        in_specs=[pl.BlockSpec((tmp, rA), lambda p, i: (p * n_inner + i, 0))],
        out_specs=pl.BlockSpec((1, rA, rA), lambda p, i: (p, 0, 0)),
        compiler_params=pltpu.CompilerParams(
            dimension_semantics=("parallel", "arbitrary"),
            vmem_limit_bytes=vmem_limit),
    )(xp)

    # fold the two core slots and the r packed phases -> true augmented Gram (A, A)
    gr = g_slots.sum(axis=0).reshape(r, A, r, A)
    g_aug = gr[0, :, 0, :]
    for a in range(1, r):
        g_aug = g_aug + gr[a, :, a, :]
    # zero-padded rows contribute nothing, so g_aug[Cin, Cin] == M exactly.

    # ---- BatchNorm batch statistics as quadratic forms of W_aug against G_aug ----
    gw = g_aug @ w_aug                                   # (A, C8)
    sum_y = gw[Cin]                                      # (C8,)  = [sum_x, M] @ W_aug
    sum_y2 = jnp.sum(w_aug * gw, axis=0)                 # (C8,)  = w_j^T G_aug w_j
    count = f32(8 * M)
    s_c = sum_y.reshape(8, Cout).sum(axis=0)
    q_c = sum_y2.reshape(8, Cout).sum(axis=0)
    mean = s_c / count
    var = jnp.maximum(q_c / count - mean * mean, 0.0)    # biased var; clamp f32 cancellation
    scale_c = gamma.astype(f32) / jnp.sqrt(var + eps)
    shift_c = beta.astype(f32) - mean * scale_c
    # TODO(synk): running_mean/running_var updates (training-time side effect) are not
    # modeled; they do not affect the forward output.

    # fold BN scale/shift into the augmented weights, then r-pack block-diagonally
    scale_big = jnp.tile(scale_c.reshape(1, Cout), (1, 8))             # (1, C8)
    shift_big = jnp.tile(shift_c.reshape(1, Cout), (1, 8))
    w_final = jnp.concatenate([w_big * scale_big,
                               b_big * scale_big + shift_big], axis=0)  # (A, C8)
    w_pack = jnp.kron(jnp.eye(r, dtype=f32), w_final)                  # (rA, rC8) block-diag

    # ---- pass 2: fused conv + BN + ReLU, one lane-dense write ----
    out_p = pl.pallas_call(
        _fused_out_kernel,
        out_shape=jax.ShapeDtypeStruct((Mp_pad, rC8), out_dtype),
        grid=(Mp_pad // tmp,),
        in_specs=[pl.BlockSpec((tmp, rA), lambda i: (i, 0)),
                  pl.BlockSpec((rA, rC8), lambda i: (0, 0))],
        out_specs=pl.BlockSpec((tmp, rC8), lambda i: (i, 0)),
        compiler_params=pltpu.CompilerParams(
            dimension_semantics=("parallel",),
            vmem_limit_bytes=vmem_limit),
    )(xp, w_pack)

    out = out_p.reshape(M_pad, C8)
    if M_pad != M:
        out = out[:M]

    # ---- glue: (M, 8*Cout) -> NCDHW (N, Cout, 2D, 2H, 2W) to match PyTorch ----
    # TODO(synk): this relayout is an extra full read+write of the big output; use
    # channels_last_output=True (or fuse into the consumer) to avoid most of it.
    out = out.reshape(N, D, H, W, 2, 2, 2, Cout)
    if channels_last_output:
        out = jnp.transpose(out, (0, 1, 4, 2, 5, 3, 6, 7))
        return out.reshape(N, 2 * D, 2 * H, 2 * W, Cout)
    out = jnp.transpose(out, (0, 7, 1, 4, 2, 5, 3, 6))
    return out.reshape(N, Cout, 2 * D, 2 * H, 2 * W)


# ---------------- pure-JAX reference ----------------

def ref_forward(x, wdw, bdw, wp, bp, gamma, beta, eps=1e-5):
    N, Cin, D, H, W = x.shape
    Cout = wp.shape[0]
    w = wdw.reshape(Cin, 2, 2, 2)
    o = (x[:, :, :, None, :, None, :, None]
         * w[None, :, None, :, None, :, None, :])
    o = o + bdw.reshape(1, Cin, 1, 1, 1, 1, 1, 1)
    o = o.reshape(N, Cin, 2 * D, 2 * H, 2 * W)
    wpm = wp.reshape(Cout, Cin)
    y = jnp.einsum('ncdhw,oc->nodhw', o, wpm) + bp.reshape(1, Cout, 1, 1, 1)
    mean = y.mean(axis=(0, 2, 3, 4), keepdims=True)
    var = jnp.mean((y - mean) ** 2, axis=(0, 2, 3, 4), keepdims=True)
    yn = (y - mean) / jnp.sqrt(var + eps)
    yn = yn * gamma.reshape(1, Cout, 1, 1, 1) + beta.reshape(1, Cout, 1, 1, 1)
    return jnp.maximum(yn, 0.0)


if __name__ == "__main__":
    # M = 2*6*8*8 = 768; with Cout=8 the output packs r=2 rows to 128 lanes.
    N, Cin, Cout, D, H, W = 2, 4, 8, 6, 8, 8

    key = jax.random.PRNGKey(0)
    kx, k1, k2, k3, k4 = jax.random.split(key, 5)
    x = jax.random.normal(kx, (N, Cin, D, H, W), jnp.float32)
    # ConvTranspose3d(Cin, Cin, k=2, groups=Cin): weight (Cin, 1, 2, 2, 2), bias (Cin,)
    wdw = jax.random.normal(k1, (Cin, 1, 2, 2, 2), jnp.float32) * 0.2
    bdw = jax.random.normal(k2, (Cin,), jnp.float32) * 0.1
    # Conv3d(Cin, Cout, 1): weight (Cout, Cin, 1, 1, 1), bias (Cout,)
    wp = jax.random.normal(k3, (Cout, Cin, 1, 1, 1), jnp.float32) * 0.2
    bp = jax.random.normal(k4, (Cout,), jnp.float32) * 0.1
    # BatchNorm3d default init
    gamma = jnp.ones((Cout,), jnp.float32)
    beta = jnp.zeros((Cout,), jnp.float32)

    ref = ref_forward(x, wdw, bdw, wp, bp, gamma, beta)

    # Default tiling.
    out = jax.block_until_ready(deds_conv(x, wdw, bdw, wp, bp, gamma, beta))
    assert out.shape == (N, Cout, 2 * D, 2 * H, 2 * W)
    np.testing.assert_allclose(np.asarray(out), np.asarray(ref), rtol=1e-4, atol=1e-4)

    # Forced small tile: exercises multi-step Gram accumulation and zero-row padding.
    out2 = jax.block_until_ready(
        deds_conv(x, wdw, bdw, wp, bp, gamma, beta, block_rows=288))
    np.testing.assert_allclose(np.asarray(out2), np.asarray(ref), rtol=1e-4, atol=1e-4)

    print("KERNEL_OK")
</pallas_src>

<mosaic_0001>
module attributes {stable_mosaic.version = 11 : i64} {
  func.func @_stats_kernel(%arg0: i32, %arg1: i32, %arg2: memref<192x10xf32, #tpu.memory_space<vmem>>, %arg3: memref<1x10x10xf32, #tpu.memory_space<vmem>>) attributes {dimension_semantics = [#tpu.dimension_semantics<parallel>, #tpu.dimension_semantics<arbitrary>], iteration_bounds = array<i64: 2, 1>, scalar_prefetch = 0 : i64, scratch_operands = 0 : i64, tpu.core_type = #tpu.core_type<tc>, window_params = [{transform_indices = @transform_0, window_bounds = array<i64: 192, 10>}, {transform_indices = @transform_1, window_bounds = array<i64: 1, 10, 10>}]} {
    %c0_i32 = arith.constant 0 : i32
    %0 = arith.cmpi eq, %arg1, %c0_i32 : i32
    %1 = arith.extui %0 : i1 to i32
    %c0_i32_0 = arith.constant 0 : i32
    %2 = arith.cmpi ne, %1, %c0_i32_0 : i32
    scf.if %2 {
      %cst_8 = arith.constant 0.000000e+00 : f32
      %9 = vector.broadcast %cst_8 : f32 to vector<1x10x10xf32>
      %c0_9 = arith.constant 0 : index
      %c0_10 = arith.constant 0 : index
      %c0_11 = arith.constant 0 : index
      %10 = vector.load %arg3[%c0_9, %c0_10, %c0_11] : memref<1x10x10xf32, #tpu.memory_space<vmem>>, vector<1x10x10xf32>
      tpu.vector_store %arg3[%c0_9, %c0_10, %c0_11], %9 {strides = array<i32>} : memref<1x10x10xf32, #tpu.memory_space<vmem>>, vector<1x10x10xf32>,
    } else {
    }
    %c0 = arith.constant 0 : index
    %c0_1 = arith.constant 0 : index
    %3 = vector.load %arg2[%c0, %c0_1] : memref<192x10xf32, #tpu.memory_space<vmem>>, vector<192x10xf32>
    %cst = arith.constant dense<0.000000e+00> : vector<10x10xf32>
    %4 = tpu.matmul %3, %3, %cst {dimension_numbers = #tpu.dot_dimension_numbers<[0], [0], [1], [1], [0, 1, 1, 1], [], []>} : vector<192x10xf32>, vector<192x10xf32>, vector<10x10xf32> -> vector<10x10xf32>
    %c0_2 = arith.constant 0 : index
    %c0_3 = arith.constant 0 : index
    %c0_4 = arith.constant 0 : index
    %5 = vector.load %arg3[%c0_2, %c0_3, %c0_4] : memref<1x10x10xf32, #tpu.memory_space<vmem>>, vector<1x10x10xf32>
    %6 = vector.shape_cast %4 : vector<10x10xf32> to vector<1x10x10xf32>
    %7 = arith.addf %5, %6 : vector<1x10x10xf32>
    %c0_5 = arith.constant 0 : index
    %c0_6 = arith.constant 0 : index
    %c0_7 = arith.constant 0 : index
    %8 = vector.load %arg3[%c0_5, %c0_6, %c0_7] : memref<1x10x10xf32, #tpu.memory_space<vmem>>, vector<1x10x10xf32>
    tpu.vector_store %arg3[%c0_5, %c0_6, %c0_7], %7 {strides = array<i32>} : memref<1x10x10xf32, #tpu.memory_space<vmem>>, vector<1x10x10xf32>,
    return
  }
  func.func @transform_0(%arg0: i32, %arg1: i32) -> (i32, i32) {
    %c1_i32 = arith.constant 1 : i32
    %0 = arith.muli %arg0, %c1_i32 : i32
    %1 = arith.addi %0, %arg1 : i32
    %c0_i32 = arith.constant 0 : i32
    %c0_i32_0 = arith.constant 0 : i32
    return %1, %c0_i32 : i32, i32
  }
  func.func @transform_1(%arg0: i32, %arg1: i32) -> (i32, i32, i32) {
    %c0_i32 = arith.constant 0 : i32
    %c0_i32_0 = arith.constant 0 : i32
    %c0_i32_1 = arith.constant 0 : i32
    return %arg0, %c0_i32, %c0_i32_0 : i32, i32, i32
  }
}

</mosaic_0001>

<llo_original>
// kernel: tpu_custom_call.1
$region0: #{tpu_custom_call.1}
  #allocation0 [shape = 'u32[]', space=smem, size = 0x4, offset = 0x4, fixed_abs, tag = 'smem constant byte address 0x4 - core index']
  #allocation1 [shape = 'u32[72,128]{1,0:T(1,128)}', space=vmem, size = 0x9000, scoped, tag = 'internal scratch']
  %s0 = inlined_call_operand.vmem [shape: f32[384,10], index: 0, kind: input, shape index: {}]
  %s1 = inlined_call_operand.vmem [shape: f32[2,10,10], index: 1, kind: output, shape index: {}]
  %s2 = sld [smem:[#allocation0]]
  $region41: #{tpu_custom_call.1} parent=0
    _
  %s4 = ssub.s32 1, %s2
  %s5 = scalar_select 0, %s4, %s2
  loop: start=0, step=1, limit=4
  $region2: #{tpu_custom_call.1} parent=0 // loop_pre_header
    _
  $region3: #{tpu_custom_call.1} parent=0 // loop_header
    %s7 = sphi 0, %s11
    %p8 = scmp.ge.s32.totalorder %s7, 4
    %s14 = sphi 0, %s26
    %s15 = sphi 0, %s22
    %s16 = sphi 0, %s14
    %s17 = sphi 0, %s15
    %s18 = sphi 0, %s16
    %s19 = sphi 0, %s17
    %s31 = sphi 0, %s33
    %s34 = sphi 0, %s31
    %s35 = sphi 0, %s34
    %s51 = sphi 0, %s35
    %s57 = sphi 0, %s59
    %s60 = sphi 0, %s57
    %s61 = sphi 0, %s60
    %s77 = sphi 0, %s61
  $region4: #{tpu_custom_call.1} parent=0 // loop_header_branch
    %10 = sbr.rel (%p8) target = $region8
  $region5: #{tpu_custom_call.1} parent=0 // loop_body
    %s12 = ssub.s32 %s7, 1
    %s13 = ssub.s32 %s7, 2
    %s20 = sadd.s32 1, %s15
    %p21 = scmp.ge.s32.totalorder %s20, 1
    %s22 = scalar_select %p21, 0, %s20
    %s23 = sadd.s32 1, %s14
    %s24 = scalar_select %p21, %s23, %s14
    %p25 = scmp.ge.s32.totalorder %s24, 2
    %s26 = scalar_select %p25, 0, %s24
    %s27 = sadd.s32 %s14, %s15
    %s28 = sadd.s32 %s26, %s22
    %s29 = ssub.s32 %s27, %s28
    %p30 = scmp.eq.s32.totalorder %s29, 0
    %s32 = sadd.s32 %s31, 1
    %s33 = scalar_select %p30, %s31, %s32
    %p36 = pneg %p30
    %p37 = scmp.eq.s32.totalorder %s7, 1
    %p38 = por %p36, %p37
    %p39 = scmp.ne.s32.totalorder %s31, %s34
    %p40 = scmp.eq.s32.totalorder %s7, 0
    %p41 = por %p39, %p40
    %p42 = scmp.ne.s32.totalorder %s31, %s34
    %p43 = scmp.eq.s32.totalorder %s12, 1
    %p44 = por %p42, %p43
    %p45 = scmp.ne.s32.totalorder %s34, %s35
    %p46 = scmp.eq.s32.totalorder %s12, 0
    %p47 = por %p45, %p46
    %p48 = scmp.ne.s32.totalorder %s34, %s35
    %p49 = scmp.eq.s32.totalorder %s13, 1
    %p50 = por %p48, %p49
    %p52 = scmp.ne.s32.totalorder %s35, %s51
    %p53 = scmp.eq.s32.totalorder %s13, 0
    %p54 = por %p52, %p53
    %s55 = ssub.s32 %s14, %s26
    %p56 = scmp.eq.s32.totalorder %s55, 0
    %s58 = sadd.s32 %s57, 1
    %s59 = scalar_select %p56, %s57, %s58
    %p62 = pneg %p56
    %p63 = scmp.eq.s32.totalorder %s7, 1
    %p64 = por %p62, %p63
    %p65 = scmp.ne.s32.totalorder %s57, %s60
    %p66 = scmp.eq.s32.totalorder %s7, 0
    %p67 = por %p65, %p66
    %p68 = scmp.ne.s32.totalorder %s57, %s60
    %p69 = scmp.eq.s32.totalorder %s12, 1
    %p70 = por %p68, %p69
    %p71 = scmp.ne.s32.totalorder %s60, %s61
    %p72 = scmp.eq.s32.totalorder %s12, 0
    %p73 = por %p71, %p72
    %p74 = scmp.ne.s32.totalorder %s60, %s61
    %p75 = scmp.eq.s32.totalorder %s13, 1
    %p76 = por %p74, %p75
    %p78 = scmp.ne.s32.totalorder %s61, %s77
    %p79 = scmp.eq.s32.totalorder %s13, 0
    %p80 = por %p78, %p79
    %p81 = scmp.le.s32.totalorder 1, %s7
    %p82 = scmp.lt.s32.totalorder %s7, 3
    %p83 = pnand %p81, %p82
    %p84 = pneg %p83
    // Predicated region
    $region9: #{tpu_custom_call.1} parent=5 // pred_check
      _
    $region10: #{tpu_custom_call.1} parent=5 // pred_check_branch
      %86 = sbr.rel (%p83) target = $region12
    $region11: #{tpu_custom_call.1} parent=5 // pred_region
      %s87 = ssub.s32 %s7, 1
    $region12: #{tpu_custom_call.1} parent=5 // pred_fallthru
      _
    %p88 = scmp.lt.s32.totalorder %s7, 2
    // Predicated region
    $region13: #{tpu_custom_call.1} parent=5 // pred_check
      %p89 = pneg %p88
    $region14: #{tpu_custom_call.1} parent=5 // pred_check_branch
      %91 = sbr.rel (%p89) target = $region16
    $region15: #{tpu_custom_call.1} parent=5 // pred_region
      // Predicated region
      $region17: #{tpu_custom_call.1} parent=15 // pred_check
        %p92 = pneg %p41
      $region18: #{tpu_custom_call.1} parent=15 // pred_check_branch
        %94 = sbr.rel (%p92) target = $region20
      $region19: #{tpu_custom_call.1} parent=15 // pred_region
        %s95 = sadd.s32 %s14, %s15
        %s96 = smul.u32 24, %s95
        %p97 = scmp.lt.s32.totalorder %s96, 47
        %s98 = scalar_select %p97, %s96, 47
        %s99 = smul.addr %s98, 8
        %s100 = scalar_lea.vmem %s0, %s99
        %s101 = sadd.s32 %s14, %s15
        %s102 = smul.u32 24, %s101
      $region20: #{tpu_custom_call.1} parent=15 // pred_fallthru
        _
    $region16: #{tpu_custom_call.1} parent=5 // pred_fallthru
      _
    %p103 = scmp.le.s32.totalorder 1, %s7
    %p104 = scmp.lt.s32.totalorder %s7, 3
    %p105 = pnand %p103, %p104
    %p106 = pneg %p105
    // Predicated region
    $region21: #{tpu_custom_call.1} parent=5 // pred_check
      _
    $region22: #{tpu_custom_call.1} parent=5 // pred_check_branch
      %108 = sbr.rel (%p105) target = $region24
    $region23: #{tpu_custom_call.1} parent=5 // pred_region
      %s109 = ssub.s32 %s7, 1
      %s110 = sadd.s32 %s16, %s17
      %s111 = smul.u32 24, %s110
      %p112 = scmp.lt.s32.totalorder %s111, 47
      %s113 = scalar_select %p112, %s111, 47
      %s114 = smul.addr %s113, 8
      %s115 = scalar_lea.vmem %s0, %s114
      %p116 = pneg %p47
      %p117 = pneg %p44
      %p118 = pneg %p73
      %p119 = pneg %p70
      %p120 = scmp.lt.s32.totalorder %s16, 1
      %s121 = scalar_select %p120, %s16, 1
      %s122 = smul.addr %s121, 2
      %s123 = smul.addr %s122, 8
      %s124 = scalar_lea.vmem %s1, %s123
      %s125 = sadd.s32 %s16, %s17
      %s126 = smul.u32 24, %s125
      %p127 = scmp.lt.s32.totalorder %s126, 47
      %s128 = scalar_select %p127, %s126, 47
      %s129 = smul.addr %s128, 8
      %s130 = scalar_lea.vmem %s0, %s129
      %s131 = sadd.s32 %s16, %s17
      %s132 = smul.u32 24, %s131
      %p133 = scmp.lt.s32.totalorder %s16, 1
      %s134 = scalar_select %p133, %s16, 1
      %s135 = smul.addr %s134, 2
      %s136 = smul.addr %s135, 8
      %s137 = scalar_lea.vmem %s1, %s136
      %p138 = scmp.eq.s32.totalorder %s17, 0
      // Predicated region
      $region25: #{tpu_custom_call.1} parent=23 // pred_check
        %p139 = pneg %p138
      $region26: #{tpu_custom_call.1} parent=23 // pred_check_branch
        %141 = sbr.rel (%p139) target = $region28
      $region27: #{tpu_custom_call.1} parent=23 // pred_region
        %vm142 = vcmask 80896
        %143 = vst.msk [vmem:[%s137] sm:$0xff] %vm142, 0.0
        %vm144 = vcmask 74752
        %145 = vst.msk [vmem:[%s137 + $0x8] sm:$0x3] %vm144, 0.0
      $region28: #{tpu_custom_call.1} parent=23 // pred_fallthru
        _
      %v146 = vld [vmem:[%s130] sm:$0xff]
      %v147 = vld [vmem:[%s130 + $0x8] sm:$0xff]
      %v148 = vld [vmem:[%s130 + $0x10] sm:$0xff]
      %v149 = vld [vmem:[%s130 + $0x18] sm:$0xff]
      %v150 = vld [vmem:[%s130 + $0x20] sm:$0xff]
      %v151 = vld [vmem:[%s130 + $0x28] sm:$0xff]
      %v152 = vld [vmem:[%s130 + $0x30] sm:$0xff]
      %v153 = vld [vmem:[%s130 + $0x38] sm:$0xff]
      %v154 = vld [vmem:[%s130 + $0x40] sm:$0xff]
      %v155 = vld [vmem:[%s130 + $0x48] sm:$0xff]
      %v156 = vld [vmem:[%s130 + $0x50] sm:$0xff]
      %v157 = vld [vmem:[%s130 + $0x58] sm:$0xff]
      %v158 = vld [vmem:[%s130 + $0x60] sm:$0xff]
      %v159 = vld [vmem:[%s130 + $0x68] sm:$0xff]
      %v160 = vld [vmem:[%s130 + $0x70] sm:$0xff]
      %v161 = vld [vmem:[%s130 + $0x78] sm:$0xff]
      %v162 = vld [vmem:[%s130 + $0x80] sm:$0xff]
      %v163 = vld [vmem:[%s130 + $0x88] sm:$0xff]
      %v164 = vld [vmem:[%s130 + $0x90] sm:$0xff]
      %v165 = vld [vmem:[%s130 + $0x98] sm:$0xff]
      %v166 = vld [vmem:[%s130 + $0xa0] sm:$0xff]
      %v167 = vld [vmem:[%s130 + $0xa8] sm:$0xff]
      %v168 = vld [vmem:[%s130 + $0xb0] sm:$0xff]
      %v169 = vld [vmem:[%s130 + $0xb8] sm:$0xff]
      %170 = vxpose.xlu0.b32.start [1/16] %v146, 128
      %171 = vxpose.xlu0.b32.cont [2/16] %v147, 128
      %172 = vxpose.xlu0.b32.cont [3/16] %v148, 128
      %173 = vxpose.xlu0.b32.cont [4/16] %v149, 128
      %174 = vxpose.xlu0.b32.cont [5/16] %v150, 128
      %175 = vxpose.xlu0.b32.cont [6/16] %v151, 128
      %176 = vxpose.xlu0.b32.cont [7/16] %v152, 128
      %177 = vxpose.xlu0.b32.cont [8/16] %v153, 128
      %178 = vxpose.xlu0.b32.cont [9/16] %v154, 128
      %179 = vxpose.xlu0.b32.cont [10/16] %v155, 128
      %180 = vxpose.xlu0.b32.cont [11/16] %v156, 128
      %181 = vxpose.xlu0.b32.cont [12/16] %v157, 128
      %182 = vxpose.xlu0.b32.cont [13/16] %v158, 128
      %183 = vxpose.xlu0.b32.cont [14/16] %v159, 128
      %184 = vxpose.xlu0.b32.cont [15/16] %v160, 128
      %185 = vxpose.xlu0.b32.end [16/16] %v161, 128
      %v186 = vpop.trf.xlu0
      %v187 = vpop.trf.xlu0
      %v188 = vpop.trf.xlu0
      %v189 = vpop.trf.xlu0
      %v190 = vpop.trf.xlu0
      %v191 = vpop.trf.xlu0
      %v192 = vpop.trf.xlu0
      %v193 = vpop.trf.xlu0
      %v194 = vpop.trf.xlu0
      %v195 = vpop.trf.xlu0
      %v196 = vpop.trf.xlu0
      %v197 = vpop.trf.xlu0
      %v198 = vpop.trf.xlu0
      %v199 = vpop.trf.xlu0
      %v200 = vpop.trf.xlu0
      %v201 = vpop.trf.xlu0
      %202 = vxpose.xlu0.b32.start [1/16] %v162, 128
      %203 = vxpose.xlu0.b32.cont [2/16] %v163, 128
      %204 = vxpose.xlu0.b32.cont [3/16] %v164, 128
      %205 = vxpose.xlu0.b32.cont [4/16] %v165, 128
      %206 = vxpose.xlu0.b32.cont [5/16] %v166, 128
      %207 = vxpose.xlu0.b32.cont [6/16] %v167, 128
      %208 = vxpose.xlu0.b32.cont [7/16] %v168, 128
      %209 = vxpose.xlu0.b32.cont [8/16] %v169, 128
      %210 = vxpose.xlu0.b32.cont [9/16] 0.0, 128
      %211 = vxpose.xlu0.b32.cont [10/16] 0.0, 128
      %212 = vxpose.xlu0.b32.cont [11/16] 0.0, 128
      %213 = vxpose.xlu0.b32.cont [12/16] 0.0, 128
      %214 = vxpose.xlu0.b32.cont [13/16] 0.0, 128
      %215 = vxpose.xlu0.b32.cont [14/16] 0.0, 128
      %216 = vxpose.xlu0.b32.cont [15/16] 0.0, 128
      %217 = vxpose.xlu0.b32.end [16/16] 0.0, 128
      %v218 = vpop.trf.xlu0
      %v219 = vpop.trf.xlu0
      %v220 = vpop.trf.xlu0
      %v221 = vpop.trf.xlu0
      %v222 = vpop.trf.xlu0
      %v223 = vpop.trf.xlu0
      %v224 = vpop.trf.xlu0
      %v225 = vpop.trf.xlu0
      %v226 = vpop.trf.xlu0
      %v227 = vpop.trf.xlu0
      %v228 = vpop.trf.xlu0
      %v229 = vpop.trf.xlu0
      %v230 = vpop.trf.xlu0
      %v231 = vpop.trf.xlu0
      %v232 = vpop.trf.xlu0
      %v233 = vpop.trf.xlu0
      %vm234 = vcmask 523264
      %v236 = vsel %vm234, %v218, 0
      %v239 = vsel %vm234, %v219, 0
      %241 = vmatpush.msra.mxu0 %v161
      %242 = vmatpush.msra.mxu0 %v160
      %243 = vmatpush.msra.mxu0 %v159
      %244 = vmatpush.msra.mxu0 %v158
      %245 = vmatpush.msra.mxu0 %v157
      %246 = vmatpush.msra.mxu0 %v156
      %247 = vmatpush.msra.mxu0 %v155
      %248 = vmatpush.msra.mxu0 %v154
      %249 = vmatpush.msra.mxu0 %v153
      %250 = vmatpush.msra.mxu0 %v152
      %251 = vmatpush.msra.mxu0 %v151
      %252 = vmatpush.msra.mxu0 %v150
      %253 = vmatpush.msra.mxu0 %v149
      %254 = vmatpush.msra.mxu0 %v148
      %255 = vmatpush.msra.mxu0 %v147
      %256 = vmatpush.msra.mxu0 %v146
      %257 = vmatmul.f32.gmra.mxu0 %v186
      %v258 = vpop.f32.mrf.mxu0
      %v259 = vadd.f32 0.0, %v258
      %260 = vmatmul.f32.gmra.mxu0 %v187
      %v261 = vpop.f32.mrf.mxu0
      %v262 = vadd.f32 0.0, %v261
      %263 = vdwg.mxu0
      %264 = vmatpush.msra.mxu0 0.0
      %265 = vmatpush.msra.mxu0 0.0
      %266 = vmatpush.msra.mxu0 0.0
      %267 = vmatpush.msra.mxu0 0.0
      %268 = vmatpush.msra.mxu0 0.0
      %269 = vmatpush.msra.mxu0 0.0
      %270 = vmatpush.msra.mxu0 0.0
      %271 = vmatpush.msra.mxu0 0.0
      %272 = vmatpush.msra.mxu0 %v169
      %273 = vmatpush.msra.mxu0 %v168
      %274 = vmatpush.msra.mxu0 %v167
      %275 = vmatpush.msra.mxu0 %v166
      %276 = vmatpush.msra.mxu0 %v165
      %277 = vmatpush.msra.mxu0 %v164
      %278 = vmatpush.msra.mxu0 %v163
      %279 = vmatpush.msra.mxu0 %v162
      %280 = vmatmul.f32.gmra.mxu0 %v236
      %v281 = vpop.f32.mrf.mxu0
      %v282 = vadd.f32 %v259, %v281
      %283 = vmatmul.f32.gmra.mxu0 %v239
      %v284 = vpop.f32.mrf.mxu0
      %v285 = vadd.f32 %v262, %v284
      %286 = vdwg.mxu0
      %v287 = vld [vmem:[%s137] sm:$0xff]
      %v288 = vld [vmem:[%s137 + $0x8] sm:$0x3]
      %v289 = vadd.f32 %v287, %v282
      %v290 = vadd.f32 %v288, %v285
      %vm291 = vcmask 80896
      %292 = vst.msk [vmem:[%s137] sm:$0xff] %vm291, %v289
      %vm293 = vcmask 74752
      %294 = vst.msk [vmem:[%s137 + $0x8] sm:$0x3] %vm293, %v290
      %p295 = scmp.lt.s32.totalorder %s16, 1
      %s296 = scalar_select %p295, %s16, 1
      %s297 = smul.addr %s296, 2
      %s298 = smul.addr %s297, 8
      %s299 = scalar_lea.vmem %s1, %s298
      // Predicated region
      $region29: #{tpu_custom_call.1} parent=23 // pred_check
        %p300 = pneg %p70
      $region30: #{tpu_custom_call.1} parent=23 // pred_check_branch
        %302 = sbr.rel (%p300) target = $region32
      $region31: #{tpu_custom_call.1} parent=23 // pred_region
        _
      $region32: #{tpu_custom_call.1} parent=23 // pred_fallthru
        _
    $region24: #{tpu_custom_call.1} parent=5 // pred_fallthru
      _
    %p303 = scmp.le.s32.totalorder 2, %s7
    // Predicated region
    $region33: #{tpu_custom_call.1} parent=5 // pred_check
      %p304 = pneg %p303
    $region34: #{tpu_custom_call.1} parent=5 // pred_check_branch
      %306 = sbr.rel (%p304) target = $region36
    $region35: #{tpu_custom_call.1} parent=5 // pred_region
      %s307 = ssub.s32 %s7, 2
      // Predicated region
      $region37: #{tpu_custom_call.1} parent=35 // pred_check
        %p308 = pneg %p76
      $region38: #{tpu_custom_call.1} parent=35 // pred_check_branch
        %310 = sbr.rel (%p308) target = $region40
      $region39: #{tpu_custom_call.1} parent=35 // pred_region
        %p311 = scmp.lt.s32.totalorder %s18, 1
        %s312 = scalar_select %p311, %s18, 1
        %s313 = smul.addr %s312, 2
        %s314 = smul.addr %s313, 8
        %s315 = scalar_lea.vmem %s1, %s314
      $region40: #{tpu_custom_call.1} parent=35 // pred_fallthru
        _
    $region36: #{tpu_custom_call.1} parent=5 // pred_fallthru
      _
  $region6: #{tpu_custom_call.1} parent=0 // loop_footer
    %s11 = sadd.s32 1, %s7
  $region7: #{tpu_custom_call.1} parent=0 // loop_footer_branch
    %6 = sbr.rel target = $region3
  $region8: #{tpu_custom_call.1} parent=0 // loop_exit
    _

</llo_original>
